<compile_context>
chip_gen: v7x
topology: tpu7x:2x2x1
jax: 0.10.0
libtpu: 0.0.40
codegen_flags: <defaults>
</compile_context>

<pallas_src>
import functools

import jax
import jax.numpy as jnp
import numpy as np
from jax.experimental import pallas as pl
from jax.experimental.pallas import tpu as pltpu


def _centred_gaussian_kernel(x_ref, w1_ref, b1_ref, w2_ref, b2_ref,
                             t12m_ref, gs_ref, eps_ref, covT_ref,
                             *, nb_actions):
    """x is batch-major (TB, OBS); covariance is written lane-dense (A*A, TB)."""
    A = nb_actions
    A3 = A * A * A

    # --- MLP: Linear -> ReLU -> Linear (bf16 MXU operands, f32 accumulation) ---
    xb = x_ref[...].astype(jnp.bfloat16)                                  # (TB, OBS)
    h = jnp.dot(xb, w1_ref[...], preferred_element_type=jnp.float32) + b1_ref[...]
    h = jnp.maximum(h, 0.0)                                               # (TB, HID) f32
    feats = (jnp.dot(h.astype(jnp.bfloat16), w2_ref[...],
                     preferred_element_type=jnp.float32) + b2_ref[...])   # (TB, OUT) f32

    # |.| only on the first A features (the std entries); cov entries untouched.
    col = jax.lax.broadcasted_iota(jnp.int32, feats.shape, 1)
    masked = jnp.where(col < A, jnp.abs(feats), feats)                    # f32 (VPU)
    masked_b = masked.astype(jnp.bfloat16)                                # (TB, OUT)

    # Fused diag-embed + lower-tri scatter + expansion, ONE matmul contracting on
    # the shared feature axis (A @ B^T form -> no explicit transpose needed):
    #   LR[       i*A*A + k*A + j, b] = L[b, i, j]
    #   LR[A^3 +  i*A*A + k*A + j, b] = L[b, k, j]
    LR = jax.lax.dot_general(t12m_ref[...], masked_b,
                             dimension_numbers=(((1,), (1,)), ((), ())),
                             preferred_element_type=jnp.float32)          # (2*A^3, TB)
    prod = LR[:A3] * LR[A3:]                                              # (A^3, TB) f32

    # Group-sum over j:  cov[i*A+k, b] = sum_j L[b,i,j] * L[b,k,j]  (+ 1e-5 on diag)
    covT_ref[...] = (jnp.dot(gs_ref[...], prod.astype(jnp.bfloat16),
                             preferred_element_type=jnp.float32)
                     + eps_ref[...])                                      # (A*A, TB)


def _placement_constants(nb_actions, out_features, correlated):
    """Constant 0/1 matrices implementing the scale_tril build + L L^T reduce."""
    A = nb_actions
    # M[f, p]: MLP feature f lands at flattened L position p = i*A + j.
    M = np.zeros((out_features, A * A), np.float32)
    for i in range(A):
        M[i, i * A + i] = 1.0                       # diag_embed(|std|)
    if correlated:
        rows, cols = np.tril_indices(A, -1)         # row-major == torch.tril_indices
        for k in range(out_features - A):
            M[A + k, rows[k] * A + cols[k]] = 1.0   # strict lower triangle <- cov

    T1 = np.zeros((A ** 3, A * A), np.float32)      # L[b,i,j] -> index i*A*A + k*A + j
    T2 = np.zeros((A ** 3, A * A), np.float32)      # L[b,k,j] -> index i*A*A + k*A + j
    GS = np.zeros((A * A, A ** 3), np.float32)      # sum over j into position i*A + k
    for i in range(A):
        for k in range(A):
            for j in range(A):
                m = i * A * A + k * A + j
                T1[m, i * A + j] = 1.0
                T2[m, k * A + j] = 1.0
                GS[i * A + k, m] = 1.0

    T12M = np.concatenate([T1 @ M.T, T2 @ M.T], axis=0)   # (2*A^3, OUT), merged constant

    eps = np.zeros((A * A, 1), np.float32)          # flattened 1e-5 * eye(A)
    for i in range(A):
        eps[i * A + i, 0] = 1e-5

    # 0/1 entries are exact in bf16 -> feed the MXU directly in bf16.
    return (jnp.asarray(T12M, jnp.bfloat16), jnp.asarray(GS, jnp.bfloat16),
            jnp.asarray(eps, jnp.float32))


def _plan_batch(B, cap=2048):
    """Return (TB, padded_B). Full batch when small; otherwise lane-aligned tiles
    with >=2 grid steps so v7x's two TensorCores both get work."""
    if B < 256:
        return B, B                               # block == full array dim: always legal
    Bp = -(-B // 128) * 128                       # lane-align
    tb = max(128, min(cap, (Bp // 2 // 128) * 128))
    Bp = -(-Bp // tb) * tb                        # pad so the tile divides the batch
    return tb, Bp


def centred_gaussian_forward(x, w1, b1, w2, b2, *, nb_actions, correlated,
                             batch_tile=None, feature_major_cov=False):
    """Returns (mean, covariance) of the centred MultivariateNormal.

    mean:       (B, A)   zeros (compile-time constant)
    covariance: (B, A, A) by default; with feature_major_cov=True it is returned
                as (A, A, B) straight from the kernel's lane-dense layout, letting
                the consumer skip an extra HBM transpose pass.
    Weights use the (in_features, out_features) / (1, out_features) convention.
    """
    B, OBS = x.shape
    HID = w1.shape[-1]
    OUT = w2.shape[-1]
    A = nb_actions
    assert OUT == (A * (A + 1) // 2 if correlated else A)

    if batch_tile is None:
        TB, Bp = _plan_batch(B)
    else:
        TB = batch_tile
        Bp = -(-B // TB) * TB
    assert Bp % TB == 0 and (TB == Bp or TB % 128 == 0), \
        "batch tile must divide the (padded) batch and be lane-aligned"

    t12m, gs, eps = _placement_constants(A, OUT, correlated)

    # Tiny one-off casts; x itself is NOT copied in the wrapper (cast per-tile
    # in-kernel). Feeding x already in bf16 from upstream halves its DMA.
    w1b = jnp.asarray(w1).reshape(OBS, HID).astype(jnp.bfloat16)
    b1f = jnp.asarray(b1).reshape(1, HID).astype(jnp.float32)
    w2b = jnp.asarray(w2).reshape(HID, OUT).astype(jnp.bfloat16)
    b2f = jnp.asarray(b2).reshape(1, OUT).astype(jnp.float32)

    xin = x if Bp == B else jnp.pad(x, ((0, Bp - B), (0, 0)))

    kernel = functools.partial(_centred_gaussian_kernel, nb_actions=A)

    covT = pl.pallas_call(
        kernel,
        out_shape=jax.ShapeDtypeStruct((A * A, Bp), jnp.float32),
        grid_spec=pltpu.PrefetchScalarGridSpec(
            num_scalar_prefetch=0,
            grid=(Bp // TB,),
            in_specs=[
                pl.BlockSpec((TB, OBS), lambda i: (i, 0)),    # x, tiled over batch
                pl.BlockSpec((OBS, HID), lambda i: (0, 0)),   # w1   (grid-invariant)
                pl.BlockSpec((1, HID), lambda i: (0, 0)),     # b1
                pl.BlockSpec((HID, OUT), lambda i: (0, 0)),   # w2
                pl.BlockSpec((1, OUT), lambda i: (0, 0)),     # b2
                pl.BlockSpec(t12m.shape, lambda i: (0, 0)),   # merged placement/expansion
                pl.BlockSpec(gs.shape, lambda i: (0, 0)),     # group-sum (L L^T reduce)
                pl.BlockSpec(eps.shape, lambda i: (0, 0)),    # flattened 1e-5 * I
            ],
            out_specs=pl.BlockSpec((A * A, TB), lambda i: (0, i)),   # lane-dense covariance
        ),
        compiler_params=pltpu.CompilerParams(
            dimension_semantics=("parallel",),
            vmem_limit_bytes=32 * 1024 * 1024),
    )(xin, w1b, b1f, w2b, b2f, t12m, gs, eps)

    mean = jnp.zeros((B, A), jnp.float32)            # centred Gaussian: loc == 0
    covT = covT[:, :B] if Bp != B else covT
    if feature_major_cov:
        return mean, covT.reshape(A, A, B)           # consumer handles layout (no HBM transpose)
    return mean, covT.T.reshape(B, A, A)


def _reference_forward(x, w1, b1, w2, b2, *, nb_actions, correlated,
                       matmul_dtype=jnp.float32):
    """Pure-JAX reference. matmul_dtype=bf16 mirrors the kernel's MXU-operand
    rounding points (f32 otherwise == exact torch semantics)."""
    A = nb_actions
    md = matmul_dtype
    h = jnp.maximum(
        jnp.dot(x.astype(md), jnp.asarray(w1).astype(md),
                preferred_element_type=jnp.float32) + jnp.asarray(b1).reshape(1, -1), 0.0)
    feats = (jnp.dot(h.astype(md), jnp.asarray(w2).astype(md),
                     preferred_element_type=jnp.float32) + jnp.asarray(b2).reshape(1, -1))
    std = feats[:, :A]
    vals = jnp.concatenate([jnp.abs(std), feats[:, A:]], axis=-1)
    vals = vals.astype(md).astype(jnp.float32)
    L = jnp.zeros((x.shape[0], A, A), jnp.float32)
    L = L.at[:, jnp.arange(A), jnp.arange(A)].set(vals[:, :A])
    if correlated:
        r, c = jnp.tril_indices(A, -1)
        L = L.at[:, r, c].set(vals[:, A:])
    prod = (L[:, :, None, :] * L[:, None, :, :]).astype(md).astype(jnp.float32)
    cov = prod.sum(-1) + 1e-5 * jnp.eye(A, dtype=jnp.float32)
    return jnp.zeros((x.shape[0], A), jnp.float32), cov


if __name__ == "__main__":
    OBS, HID, A = 32, 64, 4
    correlated = True
    OUT = A * (A + 1) // 2 if correlated else A

    key = jax.random.PRNGKey(0)
    kx, k1, k2, k3, k4 = jax.random.split(key, 5)

    # Deterministic init mimicking torch.nn.Linear's U(-1/sqrt(fan_in), 1/sqrt(fan_in)).
    bnd1 = 1.0 / np.sqrt(OBS)
    w1 = jax.random.uniform(k1, (OBS, HID), jnp.float32, -bnd1, bnd1)
    b1 = jax.random.uniform(k2, (1, HID), jnp.float32, -bnd1, bnd1)
    bnd2 = 1.0 / np.sqrt(HID)
    w2 = jax.random.uniform(k3, (HID, OUT), jnp.float32, -bnd2, bnd2)
    b2 = jax.random.uniform(k4, (1, OUT), jnp.float32, -bnd2, bnd2)

    # B=16: single-tile path.  B=512: tiled path (2 grid steps -> megacore on v7x).
    for B in (16, 512):
        x = jax.random.normal(jax.random.fold_in(kx, B), (B, OBS), jnp.float32)

        mean, cov = centred_gaussian_forward(x, w1, b1, w2, b2,
                                             nb_actions=A, correlated=correlated)
        jax.block_until_ready((mean, cov))
        assert mean.shape == (B, A) and cov.shape == (B, A, A)
        assert bool(jnp.all(mean == 0.0))

        # Tight check vs a reference mirroring the kernel's bf16 MXU operands.
        _, cov_bf = _reference_forward(x, w1, b1, w2, b2, nb_actions=A,
                                       correlated=correlated, matmul_dtype=jnp.bfloat16)
        assert jnp.allclose(cov, cov_bf, atol=1e-3, rtol=1e-3), \
            f"bf16-mirrored mismatch at B={B}"

        # Loose semantic check vs the exact-f32 (torch-equivalent) reference
        # (bf16 MXU operands -> tolerances must be relaxed).
        _, cov_f32 = _reference_forward(x, w1, b1, w2, b2, nb_actions=A,
                                        correlated=correlated, matmul_dtype=jnp.float32)
        assert jnp.allclose(cov, cov_f32, atol=5e-2, rtol=5e-2), \
            f"f32 semantic mismatch at B={B}"

    print("KERNEL_OK")
</pallas_src>

<mosaic_0001>
module attributes {stable_mosaic.version = 11 : i64} {
  func.func @_centred_gaussian_kernel(%arg0: i32, %arg1: memref<16x32xf32, #tpu.memory_space<vmem>>, %arg2: memref<32x64xbf16, #tpu.memory_space<vmem>>, %arg3: memref<1x64xf32, #tpu.memory_space<vmem>>, %arg4: memref<64x10xbf16, #tpu.memory_space<vmem>>, %arg5: memref<1x10xf32, #tpu.memory_space<vmem>>, %arg6: memref<128x10xbf16, #tpu.memory_space<vmem>>, %arg7: memref<16x64xbf16, #tpu.memory_space<vmem>>, %arg8: memref<16x1xf32, #tpu.memory_space<vmem>>, %arg9: memref<16x16xf32, #tpu.memory_space<vmem>>) attributes {dimension_semantics = [#tpu.dimension_semantics<parallel>], iteration_bounds = array<i64: 1>, scalar_prefetch = 0 : i64, scratch_operands = 0 : i64, tpu.core_type = #tpu.core_type<tc>, window_params = [{transform_indices = @transform_0, window_bounds = array<i64: 16, 32>}, {pipeline_mode = #tpu.pipeline_mode<synchronous>, transform_indices = @transform_1, window_bounds = array<i64: 32, 64>}, {pipeline_mode = #tpu.pipeline_mode<synchronous>, transform_indices = @transform_2, window_bounds = array<i64: 1, 64>}, {pipeline_mode = #tpu.pipeline_mode<synchronous>, transform_indices = @transform_3, window_bounds = array<i64: 64, 10>}, {pipeline_mode = #tpu.pipeline_mode<synchronous>, transform_indices = @transform_4, window_bounds = array<i64: 1, 10>}, {pipeline_mode = #tpu.pipeline_mode<synchronous>, transform_indices = @transform_5, window_bounds = array<i64: 128, 10>}, {pipeline_mode = #tpu.pipeline_mode<synchronous>, transform_indices = @transform_6, window_bounds = array<i64: 16, 64>}, {pipeline_mode = #tpu.pipeline_mode<synchronous>, transform_indices = @transform_7, window_bounds = array<i64: 16, 1>}, {transform_indices = @transform_8, window_bounds = array<i64: 16, 16>}]} {
    %c0 = arith.constant 0 : index
    %c0_0 = arith.constant 0 : index
    %0 = vector.load %arg1[%c0, %c0_0] : memref<16x32xf32, #tpu.memory_space<vmem>>, vector<16x32xf32>
    %1 = arith.truncf %0 : vector<16x32xf32> to vector<16x32xbf16>
    %c0_1 = arith.constant 0 : index
    %c0_2 = arith.constant 0 : index
    %2 = vector.load %arg2[%c0_1, %c0_2] : memref<32x64xbf16, #tpu.memory_space<vmem>>, vector<32x64xbf16>
    %cst = arith.constant dense<0.000000e+00> : vector<16x64xf32>
    %3 = tpu.matmul %1, %2, %cst {dimension_numbers = #tpu.dot_dimension_numbers<[1], [0], [0], [1], [0, 0, 1, 1], [], []>} : vector<16x32xbf16>, vector<32x64xbf16>, vector<16x64xf32> -> vector<16x64xf32>
    %c0_3 = arith.constant 0 : index
    %c0_4 = arith.constant 0 : index
    %4 = vector.load %arg3[%c0_3, %c0_4] : memref<1x64xf32, #tpu.memory_space<vmem>>, vector<1x64xf32>
    %5 = vector.broadcast %4 : vector<1x64xf32> to vector<16x64xf32>
    %6 = arith.addf %3, %5 : vector<16x64xf32>
    %cst_5 = arith.constant 0.000000e+00 : f32
    %7 = vector.broadcast %cst_5 : f32 to vector<16x64xf32>
    %8 = arith.maximumf %6, %7 : vector<16x64xf32>
    %9 = arith.truncf %8 : vector<16x64xf32> to vector<16x64xbf16>
    %c0_6 = arith.constant 0 : index
    %c0_7 = arith.constant 0 : index
    %10 = vector.load %arg4[%c0_6, %c0_7] : memref<64x10xbf16, #tpu.memory_space<vmem>>, vector<64x10xbf16>
    %cst_8 = arith.constant dense<0.000000e+00> : vector<16x10xf32>
    %11 = tpu.matmul %9, %10, %cst_8 {dimension_numbers = #tpu.dot_dimension_numbers<[1], [0], [0], [1], [0, 0, 1, 1], [], []>} : vector<16x64xbf16>, vector<64x10xbf16>, vector<16x10xf32> -> vector<16x10xf32>
    %c0_9 = arith.constant 0 : index
    %c0_10 = arith.constant 0 : index
    %12 = vector.load %arg5[%c0_9, %c0_10] : memref<1x10xf32, #tpu.memory_space<vmem>>, vector<1x10xf32>
    %13 = vector.broadcast %12 : vector<1x10xf32> to vector<16x10xf32>
    %14 = arith.addf %11, %13 : vector<16x10xf32>
    %15 = tpu.iota {dimensions = array<i32: 1>} : vector<16x10xi32>
    %c4_i32 = arith.constant 4 : i32
    %16 = vector.broadcast %c4_i32 : i32 to vector<16x10xi32>
    %17 = arith.cmpi slt, %15, %16 : vector<16x10xi32>
    %18 = math.absf %14 : vector<16x10xf32>
    %19 = arith.select %17, %18, %14 : vector<16x10xi1>, vector<16x10xf32>
    %20 = arith.truncf %19 : vector<16x10xf32> to vector<16x10xbf16>
    %c0_11 = arith.constant 0 : index
    %c0_12 = arith.constant 0 : index
    %21 = vector.load %arg6[%c0_11, %c0_12] : memref<128x10xbf16, #tpu.memory_space<vmem>>, vector<128x10xbf16>
    %cst_13 = arith.constant dense<0.000000e+00> : vector<128x16xf32>
    %22 = tpu.matmul %21, %20, %cst_13 {dimension_numbers = #tpu.dot_dimension_numbers<[1], [1], [0], [0], [0, 0, 1, 0], [], []>} : vector<128x10xbf16>, vector<16x10xbf16>, vector<128x16xf32> -> vector<128x16xf32>
    %23 = vector.extract_strided_slice %22 {offsets = [0, 0], sizes = [64, 16], strides = [1, 1]} : vector<128x16xf32> to vector<64x16xf32>
    %24 = vector.extract_strided_slice %22 {offsets = [64, 0], sizes = [64, 16], strides = [1, 1]} : vector<128x16xf32> to vector<64x16xf32>
    %25 = arith.mulf %23, %24 : vector<64x16xf32>
    %c0_14 = arith.constant 0 : index
    %c0_15 = arith.constant 0 : index
    %26 = vector.load %arg7[%c0_14, %c0_15] : memref<16x64xbf16, #tpu.memory_space<vmem>>, vector<16x64xbf16>
    %27 = arith.truncf %25 : vector<64x16xf32> to vector<64x16xbf16>
    %cst_16 = arith.constant dense<0.000000e+00> : vector<16x16xf32>
    %28 = tpu.matmul %26, %27, %cst_16 {dimension_numbers = #tpu.dot_dimension_numbers<[1], [0], [0], [1], [0, 0, 1, 1], [], []>} : vector<16x64xbf16>, vector<64x16xbf16>, vector<16x16xf32> -> vector<16x16xf32>
    %c0_17 = arith.constant 0 : index
    %c0_18 = arith.constant 0 : index
    %29 = vector.load %arg8[%c0_17, %c0_18] : memref<16x1xf32, #tpu.memory_space<vmem>>, vector<16x1xf32>
    %30 = vector.broadcast %29 : vector<16x1xf32> to vector<16x16xf32>
    %31 = arith.addf %28, %30 : vector<16x16xf32>
    %c0_19 = arith.constant 0 : index
    %c0_20 = arith.constant 0 : index
    %32 = vector.load %arg9[%c0_19, %c0_20] : memref<16x16xf32, #tpu.memory_space<vmem>>, vector<16x16xf32>
    tpu.vector_store %arg9[%c0_19, %c0_20], %31 {strides = array<i32>} : memref<16x16xf32, #tpu.memory_space<vmem>>, vector<16x16xf32>,
    return
  }
  func.func @transform_0(%arg0: i32) -> (i32, i32) {
    %c0_i32 = arith.constant 0 : i32
    %c0_i32_0 = arith.constant 0 : i32
    return %arg0, %c0_i32 : i32, i32
  }
  func.func @transform_1(%arg0: i32) -> (i32, i32) {
    %c0_i32 = arith.constant 0 : i32
    %c0_i32_0 = arith.constant 0 : i32
    %c0_i32_1 = arith.constant 0 : i32
    return %c0_i32, %c0_i32_0 : i32, i32
  }
  func.func @transform_2(%arg0: i32) -> (i32, i32) {
    %c0_i32 = arith.constant 0 : i32
    %c0_i32_0 = arith.constant 0 : i32
    %c0_i32_1 = arith.constant 0 : i32
    return %c0_i32, %c0_i32_0 : i32, i32
  }
  func.func @transform_3(%arg0: i32) -> (i32, i32) {
    %c0_i32 = arith.constant 0 : i32
    %c0_i32_0 = arith.constant 0 : i32
    %c0_i32_1 = arith.constant 0 : i32
    return %c0_i32, %c0_i32_0 : i32, i32
  }
  func.func @transform_4(%arg0: i32) -> (i32, i32) {
    %c0_i32 = arith.constant 0 : i32
    %c0_i32_0 = arith.constant 0 : i32
    %c0_i32_1 = arith.constant 0 : i32
    return %c0_i32, %c0_i32_0 : i32, i32
  }
  func.func @transform_5(%arg0: i32) -> (i32, i32) {
    %c0_i32 = arith.constant 0 : i32
    %c0_i32_0 = arith.constant 0 : i32
    %c0_i32_1 = arith.constant 0 : i32
    return %c0_i32, %c0_i32_0 : i32, i32
  }
  func.func @transform_6(%arg0: i32) -> (i32, i32) {
    %c0_i32 = arith.constant 0 : i32
    %c0_i32_0 = arith.constant 0 : i32
    %c0_i32_1 = arith.constant 0 : i32
    return %c0_i32, %c0_i32_0 : i32, i32
  }
  func.func @transform_7(%arg0: i32) -> (i32, i32) {
    %c0_i32 = arith.constant 0 : i32
    %c0_i32_0 = arith.constant 0 : i32
    %c0_i32_1 = arith.constant 0 : i32
    return %c0_i32, %c0_i32_0 : i32, i32
  }
  func.func @transform_8(%arg0: i32) -> (i32, i32) {
    %c0_i32 = arith.constant 0 : i32
    %c0_i32_0 = arith.constant 0 : i32
    return %c0_i32, %arg0 : i32, i32
  }
}

</mosaic_0001>

<llo_original>
// kernel: tpu_custom_call.1
$region0: #{tpu_custom_call.1}
  #allocation0 [shape = 'u32[]', space=smem, size = 0x4, offset = 0x4, fixed_abs, tag = 'smem constant byte address 0x4 - core index']
  #allocation1 [shape = 'u32[144,128]{1,0:T(1,128)}', space=vmem, size = 0x12000, scoped, tag = 'internal scratch']
  %s0 = inlined_call_operand.vmem [shape: f32[16,32], index: 0, kind: input, shape index: {}]
  %s1 = inlined_call_operand.vmem [shape: bf16[32,64], index: 1, kind: input, shape index: {}]
  %s2 = inlined_call_operand.vmem [shape: f32[1,64], index: 2, kind: input, shape index: {}]
  %s3 = inlined_call_operand.vmem [shape: bf16[64,10], index: 3, kind: input, shape index: {}]
  %s4 = inlined_call_operand.vmem [shape: f32[1,10], index: 4, kind: input, shape index: {}]
  %s5 = inlined_call_operand.vmem [shape: bf16[128,10], index: 5, kind: input, shape index: {}]
  %s6 = inlined_call_operand.vmem [shape: bf16[16,64], index: 6, kind: input, shape index: {}]
  %s7 = inlined_call_operand.vmem [shape: f32[16,1], index: 7, kind: input, shape index: {}]
  %s8 = inlined_call_operand.hbm [shape: f32[16,16], index: 8, kind: output, shape index: {}]
  %s9 = sld [smem:[#allocation0]]
  $region42: #{tpu_custom_call.1} parent=0
    _
  %s11 = ssub.s32 1, %s9
  %s12 = scalar_select 0, %s11, %s9
  $region1: #{tpu_custom_call.1} parent=0
    #allocation2 [shape = 'u8[8192]{0}', space=vmem, size = 0x2000, scoped, tag = 'output window, operand 0, single buffered']
    #allocation3 [shape = 's32[1]{0}', space=sflag, size = 0x4, scoped, tag = 'scoped memory for tpu_custom_call.1']
    %13 = vsyncpa [#allocation3], 0
    // Predicated region
    $region2: #{tpu_custom_call.1} parent=1 // pred_check
      _
    $region3: #{tpu_custom_call.1} parent=1 // pred_check_branch
      %15 = sbr.rel (0) target = $region5
    $region4: #{tpu_custom_call.1} parent=1 // pred_region
      _
    $region5: #{tpu_custom_call.1} parent=1 // pred_fallthru
      _
    // Predicated region
    $region6: #{tpu_custom_call.1} parent=1 // pred_check
      _
    $region7: #{tpu_custom_call.1} parent=1 // pred_check_branch
      %17 = sbr.rel (0) target = $region9
    $region8: #{tpu_custom_call.1} parent=1 // pred_region
      _
    $region9: #{tpu_custom_call.1} parent=1 // pred_fallthru
      _
    // Predicated region
    $region10: #{tpu_custom_call.1} parent=1 // pred_check
      _
    $region11: #{tpu_custom_call.1} parent=1 // pred_check_branch
      %19 = sbr.rel (0) target = $region13
    $region12: #{tpu_custom_call.1} parent=1 // pred_region
      _
    $region13: #{tpu_custom_call.1} parent=1 // pred_fallthru
      _
    // Predicated region
    $region14: #{tpu_custom_call.1} parent=1 // pred_check
      _
    $region15: #{tpu_custom_call.1} parent=1 // pred_check_branch
      %21 = sbr.rel (0) target = $region17
    $region16: #{tpu_custom_call.1} parent=1 // pred_region
      _
    $region17: #{tpu_custom_call.1} parent=1 // pred_fallthru
      _
    // Predicated region
    $region18: #{tpu_custom_call.1} parent=1 // pred_check
      _
    $region19: #{tpu_custom_call.1} parent=1 // pred_check_branch
      %23 = sbr.rel (0) target = $region21
    $region20: #{tpu_custom_call.1} parent=1 // pred_region
      _
    $region21: #{tpu_custom_call.1} parent=1 // pred_fallthru
      _
    // Predicated region
    $region22: #{tpu_custom_call.1} parent=1 // pred_check
      _
    $region23: #{tpu_custom_call.1} parent=1 // pred_check_branch
      %25 = sbr.rel (0) target = $region25
    $region24: #{tpu_custom_call.1} parent=1 // pred_region
      _
    $region25: #{tpu_custom_call.1} parent=1 // pred_fallthru
      _
    // Predicated region
    $region26: #{tpu_custom_call.1} parent=1 // pred_check
      _
    $region27: #{tpu_custom_call.1} parent=1 // pred_check_branch
      %27 = sbr.rel (0) target = $region29
    $region28: #{tpu_custom_call.1} parent=1 // pred_region
      _
    $region29: #{tpu_custom_call.1} parent=1 // pred_fallthru
      _
    // Predicated region
    $region30: #{tpu_custom_call.1} parent=1 // pred_check
      _
    $region31: #{tpu_custom_call.1} parent=1 // pred_check_branch
      %29 = sbr.rel (0) target = $region33
    $region32: #{tpu_custom_call.1} parent=1 // pred_region
      _
    $region33: #{tpu_custom_call.1} parent=1 // pred_fallthru
      _
    %v31 = vld [vmem:[%s0] sm:$0xff]
    %v32 = vld [vmem:[%s0 + $0x8] sm:$0xff]
    %v33 = vpack.c.bf16 %v32, %v31
    %v34 = vld [vmem:[%s1] sm:$0xf]
    %v35 = vld [vmem:[%s1 + $0x4] sm:$0xf]
    %v36 = vld [vmem:[%s1 + $0x8] sm:$0xf]
    %v37 = vld [vmem:[%s1 + $0xc] sm:$0xf]
    %v38 = vld [vmem:[%s2] sm:$0x1]
    %v40 = vlaneseq
    %v41 = vshrl.u32 %v40, 7
    %v42 = vsub.s32 0, %v41
    %v43 = vrot.slane %v38, %v42
    %v49 = vunpack.c.l.b16 %v34
    %v50 = vunpack.c.l.b16 %v35
    %v51 = vunpack.c.l.b16 %v36
    %v52 = vunpack.c.l.b16 %v37
    %v53 = vpack.c.b16 %v50, %v49
    %v54 = vpack.c.b16 %v52, %v51
    %vm57 = vcmask 261120
    %v59 = vsel %vm57, %v33, 0
    %61 = vmatprep.subr.bf16.mxu0 0
    %62 = vmatpush1.bf16.msra.mxu0 %v53
    %63 = vmatprep.subr.bf16.mxu0 0
    %64 = vmatpush1.bf16.msra.mxu0 %v54
    %65 = vmatprep.subr.bf16.mxu0 0
    %66 = vmatpush1.bf16.msra.mxu0 0
    %67 = vmatprep.subr.bf16.mxu0 0
    %68 = vmatpush1.bf16.msra.mxu0 0
    %69 = vmatprep.subr.bf16.mxu0 0
    %70 = vmatpush1.bf16.msra.mxu0 0
    %71 = vmatprep.subr.bf16.mxu0 0
    %72 = vmatpush1.bf16.msra.mxu0 0
    %73 = vmatprep.subr.bf16.mxu0 0
    %74 = vmatpush1.bf16.msra.mxu0 0
    %75 = vmatprep.subr.bf16.mxu0 0
    %76 = vmatpush1.bf16.msra.mxu0 0
    %77 = vmatprep.subr.bf16.mxu0 0
    %78 = vmatpush1.bf16.msra.mxu0 0
    %79 = vmatprep.subr.bf16.mxu0 0
    %80 = vmatpush1.bf16.msra.mxu0 0
    %81 = vmatprep.subr.bf16.mxu0 0
    %82 = vmatpush1.bf16.msra.mxu0 0
    %83 = vmatprep.subr.bf16.mxu0 0
    %84 = vmatpush1.bf16.msra.mxu0 0
    %85 = vmatprep.subr.bf16.mxu0 0
    %86 = vmatpush1.bf16.msra.mxu0 0
    %87 = vmatprep.subr.bf16.mxu0 0
    %88 = vmatpush1.bf16.msra.mxu0 0
    %89 = vmatprep.subr.bf16.mxu0 0
    %90 = vmatpush1.bf16.msra.mxu0 0
    %91 = vmatprep.subr.bf16.mxu0 0
    %92 = vmatpush1.bf16.msra.mxu0 0
    %93 = vmatprep.mubr.bf16.mxu0 0
    %94 = vmatmul.mubr.bf16.gmra.mrb[0].mxu0 %v59
    %v95 = vpop.f32.mrb[0].mxu0
    %v96 = vadd.f32 %v43, %v95
    %v97 = vpop.f32.mrb[0].mxu0
    %v98 = vpop.f32.mrb[0].mxu0
    %v99 = vadd.f32 %v43, %v98
    %v100 = vpop.f32.mrb[0].mxu0
    %101 = vdwg.mxu0
    %v102 = vmax.f32 %v96, 0.0
    %v103 = vmax.f32 %v99, 0.0
    %v104 = vpack.c.bf16 %v103, %v102
    %v105 = vld [vmem:[%s3] sm:$0xf]
    %v106 = vld [vmem:[%s3 + $0x4] sm:$0xf]
    %v107 = vld [vmem:[%s3 + $0x8] sm:$0xf]
    %v108 = vld [vmem:[%s3 + $0xc] sm:$0xf]
    %v109 = vld [vmem:[%s3 + $0x10] sm:$0xf]
    %v110 = vld [vmem:[%s3 + $0x14] sm:$0xf]
    %v111 = vld [vmem:[%s3 + $0x18] sm:$0xf]
    %v112 = vld [vmem:[%s3 + $0x1c] sm:$0xf]
    %v113 = vld [vmem:[%s4] sm:$0x1]
    %v115 = vlaneseq
    %v116 = vshrl.u32 %v115, 7
    %v117 = vsub.s32 0, %v116
    %v118 = vrot.slane %v113, %v117
    %v128 = vunpack.c.l.b16 %v105
    %v129 = vunpack.c.l.b16 %v106
    %v130 = vunpack.c.l.b16 %v107
    %v131 = vunpack.c.l.b16 %v108
    %v132 = vunpack.c.l.b16 %v109
    %v133 = vunpack.c.l.b16 %v110
    %v134 = vunpack.c.l.b16 %v111
    %v135 = vunpack.c.l.b16 %v112
    %v136 = vpack.c.b16 %v129, %v128
    %v137 = vpack.c.b16 %v131, %v130
    %v138 = vpack.c.b16 %v133, %v132
    %v139 = vpack.c.b16 %v135, %v134
    %vm144 = vcmask 523264
    %v146 = vsel %vm144, %v104, 0
    %148 = vmatprep.subr.bf16.mxu0 0
    %149 = vmatpush1.bf16.msra.mxu0 %v136
    %150 = vmatprep.subr.bf16.mxu0 0
    %151 = vmatpush1.bf16.msra.mxu0 %v137
    %152 = vmatprep.subr.bf16.mxu0 0
    %153 = vmatpush1.bf16.msra.mxu0 %v138
    %154 = vmatprep.subr.bf16.mxu0 0
    %155 = vmatpush1.bf16.msra.mxu0 %v139
    %156 = vmatprep.subr.bf16.mxu0 0
    %157 = vmatpush1.bf16.msra.mxu0 0
    %158 = vmatprep.subr.bf16.mxu0 0
    %159 = vmatpush1.bf16.msra.mxu0 0
    %160 = vmatprep.subr.bf16.mxu0 0
    %161 = vmatpush1.bf16.msra.mxu0 0
    %162 = vmatprep.subr.bf16.mxu0 0
    %163 = vmatpush1.bf16.msra.mxu0 0
    %164 = vmatprep.subr.bf16.mxu0 0
    %165 = vmatpush1.bf16.msra.mxu0 0
    %166 = vmatprep.subr.bf16.mxu0 0
    %167 = vmatpush1.bf16.msra.mxu0 0
    %168 = vmatprep.subr.bf16.mxu0 0
    %169 = vmatpush1.bf16.msra.mxu0 0
    %170 = vmatprep.subr.bf16.mxu0 0
    %171 = vmatpush1.bf16.msra.mxu0 0
    %172 = vmatprep.subr.bf16.mxu0 0
    %173 = vmatpush1.bf16.msra.mxu0 0
    %174 = vmatprep.subr.bf16.mxu0 0
    %175 = vmatpush1.bf16.msra.mxu0 0
    %176 = vmatprep.subr.bf16.mxu0 0
    %177 = vmatpush1.bf16.msra.mxu0 0
    %178 = vmatprep.subr.bf16.mxu0 0
    %179 = vmatpush1.bf16.msra.mxu0 0
    %180 = vmatprep.mubr.bf16.mxu0 0
    %181 = vmatmul.mubr.bf16.gmra.mrb[0].mxu0 %v146
    %v182 = vpop.f32.mrb[0].mxu0
    %v183 = vadd.f32 %v118, %v182
    %v184 = vpop.f32.mrb[0].mxu0
    %v185 = vpop.f32.mrb[0].mxu0
    %v186 = vadd.f32 %v118, %v185
    %v187 = vpop.f32.mrb[0].mxu0
    %188 = vdwg.mxu0
    %v189 = vlaneseq
    %v190 = vand.u32 %v189, 127
    %vm191 = vcmp.lt.s32.totalorder %v190, 4
    %v192 = vand.u32 2147483647, %v183
    %v193 = vand.u32 2147483647, %v186
    %v194 = vsel %vm191, %v192, %v183
    %v195 = vsel %vm191, %v193, %v186
    %v196 = vpack.c.bf16 %v195, %v194
    %v197 = vld [vmem:[%s5] sm:$0xf]
    %v198 = vld [vmem:[%s5 + $0x4] sm:$0xf]
    %v199 = vld [vmem:[%s5 + $0x8] sm:$0xf]
    %v200 = vld [vmem:[%s5 + $0xc] sm:$0xf]
    %v201 = vld [vmem:[%s5 + $0x10] sm:$0xf]
    %v202 = vld [vmem:[%s5 + $0x14] sm:$0xf]
    %v203 = vld [vmem:[%s5 + $0x18] sm:$0xf]
    %v204 = vld [vmem:[%s5 + $0x1c] sm:$0xf]
    %v205 = vld [vmem:[%s5 + $0x20] sm:$0xf]
    %v206 = vld [vmem:[%s5 + $0x24] sm:$0xf]
    %v207 = vld [vmem:[%s5 + $0x28] sm:$0xf]
    %v208 = vld [vmem:[%s5 + $0x2c] sm:$0xf]
    %v209 = vld [vmem:[%s5 + $0x30] sm:$0xf]
    %v210 = vld [vmem:[%s5 + $0x34] sm:$0xf]
    %v211 = vld [vmem:[%s5 + $0x38] sm:$0xf]
    %v212 = vld [vmem:[%s5 + $0x3c] sm:$0xf]
    %v229 = vunpack.c.l.b16 %v197
    %v230 = vunpack.c.l.b16 %v198
    %v231 = vunpack.c.l.b16 %v199
    %v232 = vunpack.c.l.b16 %v200
    %v233 = vunpack.c.l.b16 %v201
    %v234 = vunpack.c.l.b16 %v202
    %v235 = vunpack.c.l.b16 %v203
    %v236 = vunpack.c.l.b16 %v204
    %v237 = vunpack.c.l.b16 %v205
    %v238 = vunpack.c.l.b16 %v206
    %v239 = vunpack.c.l.b16 %v207
    %v240 = vunpack.c.l.b16 %v208
    %v241 = vunpack.c.l.b16 %v209
    %v242 = vunpack.c.l.b16 %v210
    %v243 = vunpack.c.l.b16 %v211
    %v244 = vunpack.c.l.b16 %v212
    %v245 = vpack.c.b16 %v230, %v229
    %v246 = vpack.c.b16 %v232, %v231
    %v247 = vpack.c.b16 %v234, %v233
    %v248 = vpack.c.b16 %v236, %v235
    %v249 = vpack.c.b16 %v238, %v237
    %v250 = vpack.c.b16 %v240, %v239
    %v251 = vpack.c.b16 %v242, %v241
    %v252 = vpack.c.b16 %v244, %v243
    %vm253 = vcmask 80896
    %v255 = vsel %vm253, %v245, 0
    %v258 = vsel %vm253, %v246, 0
    %v261 = vsel %vm253, %v247, 0
    %v264 = vsel %vm253, %v248, 0
    %v267 = vsel %vm253, %v249, 0
    %v270 = vsel %vm253, %v250, 0
    %v273 = vsel %vm253, %v251, 0
    %v276 = vsel %vm253, %v252, 0
    %v279 = vsel %vm253, %v196, 0
    %281 = vmatprep.subr.bf16.mxu0 0
    %282 = vmatpush1.bf16.xpose.msra.mxu0 %v279
    %283 = vmatprep.subr.bf16.mxu0 0
    %284 = vmatpush1.bf16.xpose.msra.mxu0 0
    %285 = vmatprep.subr.bf16.mxu0 0
    %286 = vmatpush1.bf16.xpose.msra.mxu0 0
    %287 = vmatprep.subr.bf16.mxu0 0
    %288 = vmatpush1.bf16.xpose.msra.mxu0 0
    %289 = vmatprep.subr.bf16.mxu0 0
    %290 = vmatpush1.bf16.xpose.msra.mxu0 0
    %291 = vmatprep.subr.bf16.mxu0 0
    %292 = vmatpush1.bf16.xpose.msra.mxu0 0
    %293 = vmatprep.subr.bf16.mxu0 0
    %294 = vmatpush1.bf16.xpose.msra.mxu0 0
    %295 = vmatprep.subr.bf16.mxu0 0
    %296 = vmatpush1.bf16.xpose.msra.mxu0 0
    %297 = vmatprep.subr.bf16.mxu0 0
    %298 = vmatpush1.bf16.xpose.msra.mxu0 0
    %299 = vmatprep.subr.bf16.mxu0 0
    %300 = vmatpush1.bf16.xpose.msra.mxu0 0
    %301 = vmatprep.subr.bf16.mxu0 0
    %302 = vmatpush1.bf16.xpose.msra.mxu0 0
    %303 = vmatprep.subr.bf16.mxu0 0
    %304 = vmatpush1.bf16.xpose.msra.mxu0 0
    %305 = vmatprep.subr.bf16.mxu0 0
    %306 = vmatpush1.bf16.xpose.msra.mxu0 0
    %307 = vmatprep.subr.bf16.mxu0 0
    %308 = vmatpush1.bf16.xpose.msra.mxu0 0
    %309 = vmatprep.subr.bf16.mxu0 0
    %310 = vmatpush1.bf16.xpose.msra.mxu0 0
    %311 = vmatprep.subr.bf16.mxu0 0
    %312 = vmatpush1.bf16.xpose.msra.mxu0 0
    %313 = vmatprep.mubr.bf16.mxu0 0
    %314 = vmatmul.mubr.bf16.gmra.mrb[0].mxu0 %v255
    %v315 = vpop.f32.mrb[0].mxu0
    %v316 = vadd.f32 0.0, %v315
    %v317 = vpop.f32.mrb[0].mxu0
    %v318 = vpop.f32.mrb[0].mxu0
    %v319 = vadd.f32 0.0, %v318
    %v320 = vpop.f32.mrb[0].mxu0
    %321 = vmatprep.mubr.bf16.mxu0 0
    %322 = vmatmul.mubr.bf16.gmra.mrb[0].mxu0 %v258
    %v323 = vpop.f32.mrb[0].mxu0
    %v324 = vadd.f32 0.0, %v323
    %v325 = vpop.f32.mrb[0].mxu0
    %v326 = vpop.f32.mrb[0].mxu0
    %v327 = vadd.f32 0.0, %v326
    %v328 = vpop.f32.mrb[0].mxu0
    %329 = vmatprep.mubr.bf16.mxu0 0
    %330 = vmatmul.mubr.bf16.gmra.mrb[0].mxu0 %v261
    %v331 = vpop.f32.mrb[0].mxu0
    %v332 = vadd.f32 0.0, %v331
    %v333 = vpop.f32.mrb[0].mxu0
    %v334 = vpop.f32.mrb[0].mxu0
    %v335 = vadd.f32 0.0, %v334
    %v336 = vpop.f32.mrb[0].mxu0
    %337 = vmatprep.mubr.bf16.mxu0 0
    %338 = vmatmul.mubr.bf16.gmra.mrb[0].mxu0 %v264
    %v339 = vpop.f32.mrb[0].mxu0
    %v340 = vadd.f32 0.0, %v339
    %v341 = vpop.f32.mrb[0].mxu0
    %v342 = vpop.f32.mrb[0].mxu0
    %v343 = vadd.f32 0.0, %v342
    %v344 = vpop.f32.mrb[0].mxu0
    %345 = vmatprep.mubr.bf16.mxu0 0
    %346 = vmatmul.mubr.bf16.gmra.mrb[0].mxu0 %v267
    %v347 = vpop.f32.mrb[0].mxu0
    %v348 = vadd.f32 0.0, %v347
    %v349 = vpop.f32.mrb[0].mxu0
    %v350 = vpop.f32.mrb[0].mxu0
    %v351 = vadd.f32 0.0, %v350
    %v352 = vpop.f32.mrb[0].mxu0
    %353 = vmatprep.mubr.bf16.mxu0 0
    %354 = vmatmul.mubr.bf16.gmra.mrb[0].mxu0 %v270
    %v355 = vpop.f32.mrb[0].mxu0
    %v356 = vadd.f32 0.0, %v355
    %v357 = vpop.f32.mrb[0].mxu0
    %v358 = vpop.f32.mrb[0].mxu0
    %v359 = vadd.f32 0.0, %v358
    %v360 = vpop.f32.mrb[0].mxu0
    %361 = vmatprep.mubr.bf16.mxu0 0
    %362 = vmatmul.mubr.bf16.gmra.mrb[0].mxu0 %v273
    %v363 = vpop.f32.mrb[0].mxu0
    %v364 = vadd.f32 0.0, %v363
    %v365 = vpop.f32.mrb[0].mxu0
    %v366 = vpop.f32.mrb[0].mxu0
    %v367 = vadd.f32 0.0, %v366
    %v368 = vpop.f32.mrb[0].mxu0
    %369 = vmatprep.mubr.bf16.mxu0 0
    %370 = vmatmul.mubr.bf16.gmra.mrb[0].mxu0 %v276
    %v371 = vpop.f32.mrb[0].mxu0
    %v372 = vadd.f32 0.0, %v371
    %v373 = vpop.f32.mrb[0].mxu0
    %v374 = vpop.f32.mrb[0].mxu0
    %v375 = vadd.f32 0.0, %v374
    %v376 = vpop.f32.mrb[0].mxu0
    %377 = vdwg.mxu0
    %v378 = vmul.f32 %v316, %v348
    %v379 = vmul.f32 %v319, %v351
    %v380 = vmul.f32 %v324, %v356
    %v381 = vmul.f32 %v327, %v359
    %v382 = vmul.f32 %v332, %v364
    %v383 = vmul.f32 %v335, %v367
    %v384 = vmul.f32 %v340, %v372
    %v385 = vmul.f32 %v343, %v375
    %v386 = vld [vmem:[%s6] sm:$0xf]
    %v387 = vld [vmem:[%s6 + $0x4] sm:$0xf]
    %v388 = vpack.c.bf16 %v379, %v378
    %v389 = vpack.c.bf16 %v381, %v380
    %v390 = vpack.c.bf16 %v383, %v382
    %v391 = vpack.c.bf16 %v385, %v384
    %v392 = vld [vmem:[%s7] sm:$0xff]
    %v393 = vld [vmem:[%s7 + $0x8] sm:$0xff]
    %395 = vset.pattern.permute.xlu0 0
    %396 = vperm.xlu0 %395, %v392
    %v397 = vpop.permute.xlu0 %396
    %400 = vset.pattern.permute.xlu0 0
    %401 = vperm.xlu0 %400, %v393
    %v402 = vpop.permute.xlu0 %401
    %v406 = vunpack.c.l.b16 %v386
    %v407 = vunpack.c.l.b16 %v387
    %v408 = vpack.c.b16 %v407, %v406
    %v410 = vsel %vm144, %v408, 0
    %412 = vmatprep.subr.bf16.mxu0 0
    %413 = vmatpush1.bf16.msra.mxu0 %v388
    %414 = vmatprep.subr.bf16.mxu0 0
    %415 = vmatpush1.bf16.msra.mxu0 %v389
    %416 = vmatprep.subr.bf16.mxu0 0
    %417 = vmatpush1.bf16.msra.mxu0 %v390
    %418 = vmatprep.subr.bf16.mxu0 0
    %419 = vmatpush1.bf16.msra.mxu0 %v391
    %420 = vmatprep.subr.bf16.mxu0 0
    %421 = vmatpush1.bf16.msra.mxu0 0
    %422 = vmatprep.subr.bf16.mxu0 0
    %423 = vmatpush1.bf16.msra.mxu0 0
    %424 = vmatprep.subr.bf16.mxu0 0
    %425 = vmatpush1.bf16.msra.mxu0 0
    %426 = vmatprep.subr.bf16.mxu0 0
    %427 = vmatpush1.bf16.msra.mxu0 0
    %428 = vmatprep.subr.bf16.mxu0 0
    %429 = vmatpush1.bf16.msra.mxu0 0
    %430 = vmatprep.subr.bf16.mxu0 0
    %431 = vmatpush1.bf16.msra.mxu0 0
    %432 = vmatprep.subr.bf16.mxu0 0
    %433 = vmatpush1.bf16.msra.mxu0 0
    %434 = vmatprep.subr.bf16.mxu0 0
    %435 = vmatpush1.bf16.msra.mxu0 0
    %436 = vmatprep.subr.bf16.mxu0 0
    %437 = vmatpush1.bf16.msra.mxu0 0
    %438 = vmatprep.subr.bf16.mxu0 0
    %439 = vmatpush1.bf16.msra.mxu0 0
    %440 = vmatprep.subr.bf16.mxu0 0
    %441 = vmatpush1.bf16.msra.mxu0 0
    %442 = vmatprep.subr.bf16.mxu0 0
    %443 = vmatpush1.bf16.msra.mxu0 0
    %444 = vmatprep.mubr.bf16.mxu0 0
    %445 = vmatmul.mubr.bf16.gmra.mrb[0].mxu0 %v410
    %v446 = vpop.f32.mrb[0].mxu0
    %v447 = vadd.f32 %v397, %v446
    %v448 = vpop.f32.mrb[0].mxu0
    %v449 = vpop.f32.mrb[0].mxu0
    %v450 = vadd.f32 %v402, %v449
    %v451 = vpop.f32.mrb[0].mxu0
    %452 = vdwg.mxu0
    %vm453 = vcmask 130048
    %454 = vst.msk [vmem:[#allocation2] sm:$0xff] %vm453, %v447
    %455 = vst.msk [vmem:[#allocation2 + $0x8] sm:$0xff] %vm453, %v450
    // Predicated region
    $region34: #{tpu_custom_call.1} parent=1 // pred_check
      _
    $region35: #{tpu_custom_call.1} parent=1 // pred_check_branch
      %457 = sbr.rel (0) target = $region37
    $region36: #{tpu_custom_call.1} parent=1 // pred_region
      %s459 = ssub.s32 256, 256
      %460 = vsyncadd [#allocation3], %s459
      %s461 = sshll.u32 [#allocation2], 4
      %s462 = int_to_ptr.vmem [resolvable:$true] %s461
      %467 = dma.vmem_to_hbm [thread:$0]  %s462, 256, %s8, [#allocation3], 128, 128, 8
    $region37: #{tpu_custom_call.1} parent=1 // pred_fallthru
      _
    // Predicated region
    $region38: #{tpu_custom_call.1} parent=1 // pred_check
      _
    $region39: #{tpu_custom_call.1} parent=1 // pred_check_branch
      %469 = sbr.rel (0) target = $region41
    $region40: #{tpu_custom_call.1} parent=1 // pred_region
      %470 = dma.done [#allocation3], 256
    $region41: #{tpu_custom_call.1} parent=1 // pred_fallthru
      _
    %471 = vsyncpa [#allocation3], 1

</llo_original>
